<compile_context>
chip_gen: v7x
topology: tpu7x:2x2x1
jax: 0.10.0
libtpu: 0.0.40
codegen_flags: <defaults>
</compile_context>

<pallas_src>
from typing import NamedTuple

import jax
import jax.numpy as jnp
from jax.experimental import pallas as pl
from jax.experimental.pallas import tpu as pltpu


def _round_up(n, m):
    return ((n + m - 1) // m) * m


class GruKernelConfig(NamedTuple):
    input_size: int
    hidden_size: int
    output_size: int
    hp: int        # padded hidden size (multiple of 128)
    op: int        # padded FC output size (multiple of 128, lane-dense)
    block_h: int   # hidden-column block width (multiple of 128)


# -----------------------------------------------------------------------------
# Kernel: one (batch-block b, hidden-block j) grid point.
# -----------------------------------------------------------------------------
def gru_decoder_kernel(
    x_ref,      # [bb, I]       f32  step input (resident across hidden blocks)
    hf_ref,     # [bb, Hp]      f32  full previous hidden (every W_h block needs all of it)
    hb_ref,     # [bb, blk]     f32  this block's previous hidden (state update term)
    w_i_ref,    # [I, 3*blk]    mxu  [W_ir^T | W_iz^T | W_in^T] columns of block j
    w_h_ref,    # [Hp, 3*blk]   mxu
    b_g_ref,    # [1, 3*blk]    f32  [b_ir+b_hr | b_iz+b_hz | b_in] of block j
    b_hn_ref,   # [1, blk]      f32
    w_fc_ref,   # [blk, Op]     mxu  rows of W_fc^T for block j
    b_fc_ref,   # [1, Op]       f32
    pred_ref,   # out [bb, Op]  f32  accumulated over hidden blocks (resident across j)
    h_new_ref,  # out [bb, blk] f32
):
    j = pl.program_id(1)
    blk = h_new_ref.shape[-1]
    mdt = w_i_ref.dtype            # MXU operand dtype (f32 or bf16); accumulation is f32

    x = x_ref[...].astype(mdt)
    h_full = hf_ref[...]           # f32

    # Two fused gate matmuls per hidden block (f32 MXU accumulation).
    g_i = jnp.dot(x, w_i_ref[...], preferred_element_type=jnp.float32) + b_g_ref[...]
    g_h = jnp.dot(h_full.astype(mdt), w_h_ref[...], preferred_element_type=jnp.float32)

    # Gate column slices are multiples of 128 -> lane-aligned static views.
    rz = jax.nn.sigmoid(g_i[:, :2 * blk] + g_h[:, :2 * blk])
    r = rz[:, :blk]
    z = rz[:, blk:]
    n = jnp.tanh(g_i[:, 2 * blk:] + r * (g_h[:, 2 * blk:] + b_hn_ref[...]))

    h_prev = hb_ref[...]                             # f32 state-update in full precision
    h_new = (1.0 - z) * n + z * h_prev
    h_new_ref[...] = h_new.astype(h_new_ref.dtype)

    # FC accumulated over hidden blocks into the resident output block (reduction axis j).
    @pl.when(j == 0)
    def _():
        pred_ref[...] = jnp.broadcast_to(b_fc_ref[...], pred_ref.shape)

    pred_ref[...] += jnp.dot(h_new.astype(mdt), w_fc_ref[...],
                             preferred_element_type=jnp.float32)


# -----------------------------------------------------------------------------
# One-time (load-time) parameter preparation — NOT on the per-step hot path.
# -----------------------------------------------------------------------------
def prepare_gru_params(params, input_size, hidden_size, output_size,
                       mxu_dtype=None, block_h=None):
    """PyTorch-layout GRU + Linear parameters -> block-interleaved kernel layouts."""
    H, I, O = hidden_size, input_size, output_size
    Hp = _round_up(H, 128)
    Op = _round_up(O, 128)

    if block_h is None:
        # Prefer 256+/512-wide blocks (v6e/v7x MXU is 2x256^2); fall back to 128.
        blk = 512 if Hp % 512 == 0 else (256 if Hp % 256 == 0 else 128)
    else:
        blk = int(block_h)
    assert blk % 128 == 0 and Hp % blk == 0
    n_blk = Hp // blk

    if mxu_dtype is None:
        # Small hidden sizes: keep f32 MXU operands (negligible FLOPs, no recurrent bf16 drift).
        mxu_dtype = jnp.float32 if Hp <= 256 else jnp.bfloat16

    w_ih = jnp.asarray(params["weight_ih_l0"], jnp.float32)   # [3H, I] rows: r|z|n
    w_hh = jnp.asarray(params["weight_hh_l0"], jnp.float32)   # [3H, H]
    b_ih = jnp.asarray(params["bias_ih_l0"], jnp.float32)     # [3H]
    b_hh = jnp.asarray(params["bias_hh_l0"], jnp.float32)     # [3H]
    w_fc = jnp.asarray(params["fc_weight"], jnp.float32)      # [O, H]
    b_fc = jnp.asarray(params["fc_bias"], jnp.float32)        # [O]

    def gate_cols(mat_t, g):        # mat_t: [rows, 3H]  ->  [rows, H] of gate g (r,z,n order)
        return mat_t[:, g * H:(g + 1) * H]

    w_ih_t = w_ih.T                 # [I, 3H]
    w_hh_t = w_hh.T                 # [H, 3H]

    # Block-interleaved gate weights: block j occupies columns [j*3*blk, (j+1)*3*blk) as
    # [r-block-j | z-block-j | n-block-j], each zero-padded to the padded hidden dim.
    gates_i = [jnp.pad(gate_cols(w_ih_t, g), ((0, 0), (0, Hp - H))) for g in range(3)]
    w_i = jnp.stack([g.reshape(I, n_blk, blk) for g in gates_i], axis=2)
    w_i = w_i.reshape(I, n_blk * 3 * blk).astype(mxu_dtype)                 # [I, 3*Hp]

    gates_h = [jnp.pad(gate_cols(w_hh_t, g), ((0, Hp - H), (0, Hp - H))) for g in range(3)]
    w_h = jnp.stack([g.reshape(Hp, n_blk, blk) for g in gates_h], axis=2)
    w_h = w_h.reshape(Hp, n_blk * 3 * blk).astype(mxu_dtype)                # [Hp, 3*Hp]

    def pad_h(v):
        return jnp.pad(v, (0, Hp - H))

    # Fused bias added to the input-side matmul: [b_ir+b_hr | b_iz+b_hz | b_in] per block;
    # b_hn stays separate (the n gate needs r*(W_hn h + b_hn)).
    b_r = pad_h(b_ih[0:H] + b_hh[0:H])
    b_z = pad_h(b_ih[H:2 * H] + b_hh[H:2 * H])
    b_n = pad_h(b_ih[2 * H:3 * H])
    b_g = jnp.stack([b_r.reshape(n_blk, blk), b_z.reshape(n_blk, blk),
                     b_n.reshape(n_blk, blk)], axis=1)
    b_g = b_g.reshape(1, n_blk * 3 * blk).astype(jnp.float32)               # [1, 3*Hp]
    b_hn = pad_h(b_hh[2 * H:3 * H]).reshape(1, Hp).astype(jnp.float32)      # [1, Hp]

    # Final Linear: pre-transposed, lane-dense padded. Rows follow the padded hidden dim,
    # so row block j matches h_new block j.
    w_fc_t = jnp.pad(w_fc.T, ((0, Hp - H), (0, Op - O))).astype(mxu_dtype)  # [Hp, Op]
    b_fc_p = jnp.pad(b_fc, (0, Op - O)).reshape(1, Op).astype(jnp.float32)  # [1, Op]

    cfg = GruKernelConfig(input_size=I, hidden_size=H, output_size=O,
                          hp=Hp, op=Op, block_h=blk)
    return (w_i, w_h, b_g, b_hn, w_fc_t, b_fc_p), cfg


# -----------------------------------------------------------------------------
# Per-step forward (jit with static_argnums=(3, 4)).
# -----------------------------------------------------------------------------
def gru_decoder_forward(inputs, prev_hidden, prep, cfg, batch_block=None):
    """
    inputs:      [B, 1, input_size]
    prev_hidden: [1, B, hidden_size]
    returns: (prediction [B, 1, output_size], hidden [1, B, hidden_size])
    """
    w_i, w_h, b_g, b_hn, w_fc, b_fc = prep
    B, S, I = inputs.shape
    assert S == 1, "GruDecoder is a single-step decoder (seq_len must be 1)"
    assert I == cfg.input_size
    H, Hp, Op, O, blk = cfg.hidden_size, cfg.hp, cfg.op, cfg.output_size, cfg.block_h
    n_h = Hp // blk

    bb = min(_round_up(B, 8), 256) if batch_block is None else int(batch_block)
    assert bb % 8 == 0
    Bp = _round_up(B, bb)
    n_b = Bp // bb

    x = inputs.reshape(B, I).astype(jnp.float32)
    h = prev_hidden.reshape(B, H).astype(jnp.float32)
    if Bp != B:
        x = jnp.pad(x, ((0, Bp - B), (0, 0)))
        h = jnp.pad(h, ((0, Bp - B), (0, 0)))
    if Hp != H:
        h = jnp.pad(h, ((0, 0), (0, Hp - H)))   # padded hidden columns stay exactly zero

    # Chip-aware scoped-VMEM limit (~80% of physical; v7x has only 64 MiB total).
    try:
        vmem_cap = int(pltpu.get_tpu_info().vmem_capacity_bytes)
    except Exception:
        vmem_cap = 128 * 1024 * 1024
    vmem_limit = max(32 * 1024 * 1024, int(0.8 * vmem_cap))

    wsz = w_i.dtype.itemsize
    weight_bytes = ((w_i.size + w_h.size + w_fc.size) * wsz
                    + (b_g.size + b_hn.size + b_fc.size) * 4)
    bytes_accessed = int(n_b * weight_bytes + (x.size + 2 * h.size) * 4
                         + (Bp * Op + Bp * Hp) * 4)
    flops = int(2 * Bp * (I * 3 * Hp + Hp * 3 * Hp + Hp * Op))
    cost = pl.CostEstimate(flops=flops, transcendentals=int(3 * Bp * Hp),
                           bytes_accessed=bytes_accessed)

    # Grid: (batch blocks, hidden blocks). Hidden axis is the FC reduction -> last, "arbitrary".
    grid = (n_b, n_h)
    in_specs = [
        pl.BlockSpec((bb, I), lambda b, j: (b, 0)),         # x        (resident over j)
        pl.BlockSpec((bb, Hp), lambda b, j: (b, 0)),        # h full   (resident over j)
        pl.BlockSpec((bb, blk), lambda b, j: (b, j)),       # h block  (state update term)
        pl.BlockSpec((I, 3 * blk), lambda b, j: (0, j)),    # W_i block (streamed/pipelined)
        pl.BlockSpec((Hp, 3 * blk), lambda b, j: (0, j)),   # W_h block (streamed/pipelined)
        pl.BlockSpec((1, 3 * blk), lambda b, j: (0, j)),    # fused gate bias block
        pl.BlockSpec((1, blk), lambda b, j: (0, j)),        # b_hn block
        pl.BlockSpec((blk, Op), lambda b, j: (j, 0)),       # W_fc block
        pl.BlockSpec((1, Op), lambda b, j: (0, 0)),         # b_fc
    ]
    out_specs = [
        pl.BlockSpec((bb, Op), lambda b, j: (b, 0)),        # pred (accumulated over j)
        pl.BlockSpec((bb, blk), lambda b, j: (b, j)),       # h_new
    ]

    pred_pad, h_new_pad = pl.pallas_call(
        gru_decoder_kernel,
        out_shape=(
            jax.ShapeDtypeStruct((Bp, Op), jnp.float32),
            jax.ShapeDtypeStruct((Bp, Hp), jnp.float32),
        ),
        grid_spec=pltpu.PrefetchScalarGridSpec(
            num_scalar_prefetch=0, grid=grid,
            in_specs=in_specs, out_specs=out_specs),
        # Hidden state updated in place: padded h (fresh in-jit buffer) aliases h_new.
        input_output_aliases={1: 1},
        compiler_params=pltpu.CompilerParams(
            dimension_semantics=("parallel", "arbitrary"),
            vmem_limit_bytes=vmem_limit),
        cost_estimate=cost,
    )(x, h, h, w_i, w_h, b_g, b_hn, w_fc, b_fc)

    prediction = pred_pad[:B, :O].reshape(B, 1, O)
    hidden = h_new_pad[:B, :H].reshape(1, B, H)
    return prediction, hidden


# -----------------------------------------------------------------------------
# Synthetic init (PyTorch shapes, U(-1/sqrt(H), 1/sqrt(H))) and pure-JAX reference.
# -----------------------------------------------------------------------------
def init_params(key, input_size, hidden_size, output_size):
    H = hidden_size
    k = 1.0 / jnp.sqrt(jnp.float32(H))
    keys = jax.random.split(key, 6)
    return {
        "weight_ih_l0": jax.random.uniform(keys[0], (3 * H, input_size), jnp.float32, -k, k),
        "weight_hh_l0": jax.random.uniform(keys[1], (3 * H, H), jnp.float32, -k, k),
        "bias_ih_l0": jax.random.uniform(keys[2], (3 * H,), jnp.float32, -k, k),
        "bias_hh_l0": jax.random.uniform(keys[3], (3 * H,), jnp.float32, -k, k),
        "fc_weight": jax.random.uniform(keys[4], (output_size, H), jnp.float32, -k, k),
        "fc_bias": jax.random.uniform(keys[5], (output_size,), jnp.float32, -k, k),
    }


def _reference_forward(inputs, prev_hidden, params, mxu_dtype=None):
    """Pure-JAX reference of the PyTorch GRU step + Linear. If mxu_dtype is given, matmul
    operands are rounded to it first (mirrors the kernel's low-precision MXU operands)."""
    if mxu_dtype is None:
        c = lambda a: a
    else:
        c = lambda a: a.astype(mxu_dtype).astype(jnp.float32)
    B, _, I = inputs.shape
    H = prev_hidden.shape[-1]
    x = inputs.reshape(B, I)
    h = prev_hidden.reshape(B, H)
    w_ih, w_hh = params["weight_ih_l0"], params["weight_hh_l0"]
    b_ih, b_hh = params["bias_ih_l0"], params["bias_hh_l0"]
    gi = c(x) @ c(w_ih).T + b_ih
    gh = c(h) @ c(w_hh).T + b_hh
    i_r, i_z, i_n = gi[:, :H], gi[:, H:2 * H], gi[:, 2 * H:]
    h_r, h_z, h_n = gh[:, :H], gh[:, H:2 * H], gh[:, 2 * H:]
    r = jax.nn.sigmoid(i_r + h_r)
    z = jax.nn.sigmoid(i_z + h_z)
    n = jnp.tanh(i_n + r * h_n)
    h_new = (1.0 - z) * n + z * h
    pred = c(h_new) @ c(params["fc_weight"]).T + params["fc_bias"]
    return pred.reshape(B, 1, -1), h_new.reshape(1, B, H)


def _run_case(name, key, *, batch, input_size, hidden_size, output_size,
              mxu_dtype=None, block_h=None, batch_block=None,
              tol_kernel=2e-2, tol_exact=2e-2):
    k_param, k_x, k_h = jax.random.split(key, 3)
    params = init_params(k_param, input_size, hidden_size, output_size)
    inputs = jax.random.normal(k_x, (batch, 1, input_size), jnp.float32)
    prev_hidden = jax.random.normal(k_h, (1, batch, hidden_size), jnp.float32)

    prep, cfg = prepare_gru_params(params, input_size, hidden_size, output_size,
                                   mxu_dtype=mxu_dtype, block_h=block_h)

    step = jax.jit(gru_decoder_forward, static_argnums=(3, 4))
    prediction, hidden = step(inputs, prev_hidden, prep, cfg, batch_block)
    prediction = jax.block_until_ready(prediction)
    hidden = jax.block_until_ready(hidden)

    assert prediction.shape == (batch, 1, output_size), name
    assert hidden.shape == (1, batch, hidden_size), name

    # Reference mirroring the kernel's MXU operand dtype (tolerance covers TPU MXU
    # f32-emulation / accumulation-order differences vs. the XLA reference matmul).
    mdt = prep[0].dtype
    ref_dt = None if mdt == jnp.float32 else mdt
    ref_p, ref_h = _reference_forward(inputs, prev_hidden, params, mxu_dtype=ref_dt)
    assert jnp.allclose(prediction, ref_p, atol=tol_kernel, rtol=tol_kernel), name
    assert jnp.allclose(hidden, ref_h, atol=tol_kernel, rtol=tol_kernel), name

    # Exact-f32 PyTorch-equivalent reference (looser when MXU operands are bf16).
    ref_p, ref_h = _reference_forward(inputs, prev_hidden, params)
    assert jnp.allclose(prediction, ref_p, atol=tol_exact, rtol=tol_exact), name
    assert jnp.allclose(hidden, ref_h, atol=tol_exact, rtol=tol_exact), name


if __name__ == "__main__":
    key = jax.random.PRNGKey(0)
    k_a, k_b = jax.random.split(key)

    # Case A: module-sized demo shapes (small H -> auto f32 MXU operands, grid (1, 1)).
    _run_case("small", k_a, batch=8, input_size=4, hidden_size=32, output_size=1,
              tol_kernel=2e-2, tol_exact=2e-2)

    # Case B: exercises the tiled/pipelined path: 2 batch blocks x 2 hidden blocks,
    # bf16 MXU operands with f32 accumulation (production dtype).
    _run_case("tiled", k_b, batch=16, input_size=4, hidden_size=256, output_size=1,
              mxu_dtype=jnp.bfloat16, block_h=128, batch_block=8,
              tol_kernel=3e-3, tol_exact=6e-2)

    print("KERNEL_OK")
</pallas_src>

<mosaic_0001>
module attributes {stable_mosaic.version = 11 : i64} {
  func.func @gru_decoder_kernel(%arg0: i32, %arg1: i32, %arg2: memref<8x4xf32, #tpu.memory_space<vmem>>, %arg3: memref<8x128xf32, #tpu.memory_space<vmem>>, %arg4: memref<8x128xf32, #tpu.memory_space<vmem>>, %arg5: memref<4x384xf32, #tpu.memory_space<vmem>>, %arg6: memref<128x384xf32, #tpu.memory_space<vmem>>, %arg7: memref<1x384xf32, #tpu.memory_space<vmem>>, %arg8: memref<1x128xf32, #tpu.memory_space<vmem>>, %arg9: memref<128x128xf32, #tpu.memory_space<vmem>>, %arg10: memref<1x128xf32, #tpu.memory_space<vmem>>, %arg11: memref<8x128xf32, #tpu.memory_space<vmem>>, %arg12: memref<8x128xf32, #tpu.memory_space<vmem>>) attributes {dimension_semantics = [#tpu.dimension_semantics<parallel>, #tpu.dimension_semantics<arbitrary>], iteration_bounds = array<i64: 1, 1>, scalar_prefetch = 0 : i64, scratch_operands = 0 : i64, tpu.core_type = #tpu.core_type<tc>, window_params = [{transform_indices = @transform_0, window_bounds = array<i64: 8, 4>}, {transform_indices = @transform_1, window_bounds = array<i64: 8, 128>}, {transform_indices = @transform_2, window_bounds = array<i64: 8, 128>}, {transform_indices = @transform_3, window_bounds = array<i64: 4, 384>}, {transform_indices = @transform_4, window_bounds = array<i64: 128, 384>}, {transform_indices = @transform_5, window_bounds = array<i64: 1, 384>}, {transform_indices = @transform_6, window_bounds = array<i64: 1, 128>}, {transform_indices = @transform_7, window_bounds = array<i64: 128, 128>}, {pipeline_mode = #tpu.pipeline_mode<synchronous>, transform_indices = @transform_8, window_bounds = array<i64: 1, 128>}, {transform_indices = @transform_9, window_bounds = array<i64: 8, 128>}, {transform_indices = @transform_10, window_bounds = array<i64: 8, 128>}]} {
    %c0 = arith.constant 0 : index
    %c0_0 = arith.constant 0 : index
    %0 = vector.load %arg2[%c0, %c0_0] : memref<8x4xf32, #tpu.memory_space<vmem>>, vector<8x4xf32>
    %c0_1 = arith.constant 0 : index
    %c0_2 = arith.constant 0 : index
    %1 = vector.load %arg3[%c0_1, %c0_2] : memref<8x128xf32, #tpu.memory_space<vmem>>, vector<8x128xf32>
    %c0_3 = arith.constant 0 : index
    %c0_4 = arith.constant 0 : index
    %2 = vector.load %arg5[%c0_3, %c0_4] : memref<4x384xf32, #tpu.memory_space<vmem>>, vector<4x384xf32>
    %cst = arith.constant dense<0.000000e+00> : vector<8x384xf32>
    %3 = tpu.matmul %0, %2, %cst {dimension_numbers = #tpu.dot_dimension_numbers<[1], [0], [0], [1], [0, 0, 1, 1], [], []>} : vector<8x4xf32>, vector<4x384xf32>, vector<8x384xf32> -> vector<8x384xf32>
    %c0_5 = arith.constant 0 : index
    %c0_6 = arith.constant 0 : index
    %4 = vector.load %arg7[%c0_5, %c0_6] : memref<1x384xf32, #tpu.memory_space<vmem>>, vector<1x384xf32>
    %5 = vector.broadcast %4 : vector<1x384xf32> to vector<8x384xf32>
    %6 = arith.addf %3, %5 : vector<8x384xf32>
    %c0_7 = arith.constant 0 : index
    %c0_8 = arith.constant 0 : index
    %7 = vector.load %arg6[%c0_7, %c0_8] : memref<128x384xf32, #tpu.memory_space<vmem>>, vector<128x384xf32>
    %cst_9 = arith.constant dense<0.000000e+00> : vector<8x384xf32>
    %8 = tpu.matmul %1, %7, %cst_9 {dimension_numbers = #tpu.dot_dimension_numbers<[1], [0], [0], [1], [0, 0, 1, 1], [], []>} : vector<8x128xf32>, vector<128x384xf32>, vector<8x384xf32> -> vector<8x384xf32>
    %9 = vector.extract_strided_slice %6 {offsets = [0, 0], sizes = [8, 256], strides = [1, 1]} : vector<8x384xf32> to vector<8x256xf32>
    %10 = vector.extract_strided_slice %8 {offsets = [0, 0], sizes = [8, 256], strides = [1, 1]} : vector<8x384xf32> to vector<8x256xf32>
    %11 = arith.addf %9, %10 : vector<8x256xf32>
    %12 = arith.negf %11 : vector<8x256xf32>
    %13 = math.exp %12 : vector<8x256xf32>
    %cst_10 = arith.constant 1.000000e+00 : f32
    %14 = vector.broadcast %cst_10 : f32 to vector<8x256xf32>
    %15 = arith.addf %14, %13 : vector<8x256xf32>
    %16 = arith.divf %14, %15 : vector<8x256xf32>
    %17 = vector.extract_strided_slice %16 {offsets = [0, 0], sizes = [8, 128], strides = [1, 1]} : vector<8x256xf32> to vector<8x128xf32>
    %18 = vector.extract_strided_slice %16 {offsets = [0, 128], sizes = [8, 128], strides = [1, 1]} : vector<8x256xf32> to vector<8x128xf32>
    %19 = vector.extract_strided_slice %6 {offsets = [0, 256], sizes = [8, 128], strides = [1, 1]} : vector<8x384xf32> to vector<8x128xf32>
    %20 = vector.extract_strided_slice %8 {offsets = [0, 256], sizes = [8, 128], strides = [1, 1]} : vector<8x384xf32> to vector<8x128xf32>
    %c0_11 = arith.constant 0 : index
    %c0_12 = arith.constant 0 : index
    %21 = vector.load %arg8[%c0_11, %c0_12] : memref<1x128xf32, #tpu.memory_space<vmem>>, vector<1x128xf32>
    %22 = vector.broadcast %21 : vector<1x128xf32> to vector<8x128xf32>
    %23 = arith.addf %20, %22 : vector<8x128xf32>
    %24 = arith.mulf %17, %23 : vector<8x128xf32>
    %25 = arith.addf %19, %24 : vector<8x128xf32>
    %26 = math.tanh %25 : vector<8x128xf32>
    %c0_13 = arith.constant 0 : index
    %c0_14 = arith.constant 0 : index
    %27 = vector.load %arg4[%c0_13, %c0_14] : memref<8x128xf32, #tpu.memory_space<vmem>>, vector<8x128xf32>
    %cst_15 = arith.constant 1.000000e+00 : f32
    %28 = vector.broadcast %cst_15 : f32 to vector<8x128xf32>
    %29 = arith.subf %28, %18 : vector<8x128xf32>
    %30 = arith.mulf %29, %26 : vector<8x128xf32>
    %31 = arith.mulf %18, %27 : vector<8x128xf32>
    %32 = arith.addf %30, %31 : vector<8x128xf32>
    %c0_16 = arith.constant 0 : index
    %c0_17 = arith.constant 0 : index
    %33 = vector.load %arg12[%c0_16, %c0_17] : memref<8x128xf32, #tpu.memory_space<vmem>>, vector<8x128xf32>
    tpu.vector_store %arg12[%c0_16, %c0_17], %32 {strides = array<i32>} : memref<8x128xf32, #tpu.memory_space<vmem>>, vector<8x128xf32>,
    %c0_i32 = arith.constant 0 : i32
    %34 = arith.cmpi eq, %arg1, %c0_i32 : i32
    %35 = arith.extui %34 : i1 to i32
    %c0_i32_18 = arith.constant 0 : i32
    %36 = arith.cmpi ne, %35, %c0_i32_18 : i32
    scf.if %36 {
      %c0_26 = arith.constant 0 : index
      %c0_27 = arith.constant 0 : index
      %42 = vector.load %arg10[%c0_26, %c0_27] : memref<1x128xf32, #tpu.memory_space<vmem>>, vector<1x128xf32>
      %43 = vector.shape_cast %42 : vector<1x128xf32> to vector<1x128xf32>
      %44 = vector.broadcast %43 : vector<1x128xf32> to vector<8x128xf32>
      %c0_28 = arith.constant 0 : index
      %c0_29 = arith.constant 0 : index
      %45 = vector.load %arg11[%c0_28, %c0_29] : memref<8x128xf32, #tpu.memory_space<vmem>>, vector<8x128xf32>
      tpu.vector_store %arg11[%c0_28, %c0_29], %44 {strides = array<i32>} : memref<8x128xf32, #tpu.memory_space<vmem>>, vector<8x128xf32>,
    } else {
    }
    %c0_19 = arith.constant 0 : index
    %c0_20 = arith.constant 0 : index
    %37 = vector.load %arg11[%c0_19, %c0_20] : memref<8x128xf32, #tpu.memory_space<vmem>>, vector<8x128xf32>
    %c0_21 = arith.constant 0 : index
    %c0_22 = arith.constant 0 : index
    %38 = vector.load %arg9[%c0_21, %c0_22] : memref<128x128xf32, #tpu.memory_space<vmem>>, vector<128x128xf32>
    %cst_23 = arith.constant dense<0.000000e+00> : vector<8x128xf32>
    %39 = tpu.matmul %32, %38, %cst_23 {dimension_numbers = #tpu.dot_dimension_numbers<[1], [0], [0], [1], [0, 0, 1, 1], [], []>} : vector<8x128xf32>, vector<128x128xf32>, vector<8x128xf32> -> vector<8x128xf32>
    %40 = arith.addf %37, %39 : vector<8x128xf32>
    %c0_24 = arith.constant 0 : index
    %c0_25 = arith.constant 0 : index
    %41 = vector.load %arg11[%c0_24, %c0_25] : memref<8x128xf32, #tpu.memory_space<vmem>>, vector<8x128xf32>
    tpu.vector_store %arg11[%c0_24, %c0_25], %40 {strides = array<i32>} : memref<8x128xf32, #tpu.memory_space<vmem>>, vector<8x128xf32>,
    return
  }
  func.func @transform_0(%arg0: i32, %arg1: i32) -> (i32, i32) {
    %c0_i32 = arith.constant 0 : i32
    %c0_i32_0 = arith.constant 0 : i32
    return %arg0, %c0_i32 : i32, i32
  }
  func.func @transform_1(%arg0: i32, %arg1: i32) -> (i32, i32) {
    %c0_i32 = arith.constant 0 : i32
    %c0_i32_0 = arith.constant 0 : i32
    return %arg0, %c0_i32 : i32, i32
  }
  func.func @transform_2(%arg0: i32, %arg1: i32) -> (i32, i32) {
    %c0_i32 = arith.constant 0 : i32
    return %arg0, %arg1 : i32, i32
  }
  func.func @transform_3(%arg0: i32, %arg1: i32) -> (i32, i32) {
    %c0_i32 = arith.constant 0 : i32
    %c0_i32_0 = arith.constant 0 : i32
    return %c0_i32, %arg1 : i32, i32
  }
  func.func @transform_4(%arg0: i32, %arg1: i32) -> (i32, i32) {
    %c0_i32 = arith.constant 0 : i32
    %c0_i32_0 = arith.constant 0 : i32
    return %c0_i32, %arg1 : i32, i32
  }
  func.func @transform_5(%arg0: i32, %arg1: i32) -> (i32, i32) {
    %c0_i32 = arith.constant 0 : i32
    %c0_i32_0 = arith.constant 0 : i32
    return %c0_i32, %arg1 : i32, i32
  }
  func.func @transform_6(%arg0: i32, %arg1: i32) -> (i32, i32) {
    %c0_i32 = arith.constant 0 : i32
    %c0_i32_0 = arith.constant 0 : i32
    return %c0_i32, %arg1 : i32, i32
  }
  func.func @transform_7(%arg0: i32, %arg1: i32) -> (i32, i32) {
    %c0_i32 = arith.constant 0 : i32
    %c0_i32_0 = arith.constant 0 : i32
    return %arg1, %c0_i32 : i32, i32
  }
  func.func @transform_8(%arg0: i32, %arg1: i32) -> (i32, i32) {
    %c0_i32 = arith.constant 0 : i32
    %c0_i32_0 = arith.constant 0 : i32
    %c0_i32_1 = arith.constant 0 : i32
    return %c0_i32, %c0_i32_0 : i32, i32
  }
  func.func @transform_9(%arg0: i32, %arg1: i32) -> (i32, i32) {
    %c0_i32 = arith.constant 0 : i32
    %c0_i32_0 = arith.constant 0 : i32
    return %arg0, %c0_i32 : i32, i32
  }
  func.func @transform_10(%arg0: i32, %arg1: i32) -> (i32, i32) {
    %c0_i32 = arith.constant 0 : i32
    return %arg0, %arg1 : i32, i32
  }
}

</mosaic_0001>

<llo_original>
// kernel: gru_decoder_forward.1
$region0: #{gru_decoder_forward.1}
  #allocation0 [shape = 'u32[]', space=smem, size = 0x4, offset = 0x4, fixed_abs, tag = 'smem constant byte address 0x4 - core index']
  #allocation1 [shape = 'u32[144,128]{1,0:T(1,128)}', space=vmem, size = 0x12000, scoped, tag = 'internal scratch']
  %s0 = inlined_call_operand.hbm [shape: f32[8,4], index: 0, kind: input, shape index: {}]
  %s1 = inlined_call_operand.hbm [shape: f32[8,128], index: 1, kind: input, shape index: {}, may-alias: {1,10}]
  %s2 = inlined_call_operand.hbm [shape: f32[8,128], index: 2, kind: input, shape index: {}]
  %s3 = inlined_call_operand.hbm [shape: f32[4,384], index: 3, kind: input, shape index: {}]
  %s4 = inlined_call_operand.hbm [shape: f32[128,384], index: 4, kind: input, shape index: {}]
  %s5 = inlined_call_operand.hbm [shape: f32[1,384], index: 5, kind: input, shape index: {}]
  %s6 = inlined_call_operand.hbm [shape: f32[1,128], index: 6, kind: input, shape index: {}]
  %s7 = inlined_call_operand.hbm [shape: f32[128,128], index: 7, kind: input, shape index: {}]
  %s8 = inlined_call_operand.hbm [shape: f32[1,128], index: 8, kind: input, shape index: {}]
  %s9 = inlined_call_operand.hbm [shape: f32[8,128], index: 9, kind: output, shape index: {0}]
  %s10 = inlined_call_operand.hbm [shape: f32[8,128], index: 10, kind: output, shape index: {1}, may-alias: {1,10}]
  %11 = xla_tuple %s9, %s10
  %s12 = sld [smem:[#allocation0]]
  $region94: #{gru_decoder_forward.1} parent=0
    _
  %s14 = ssub.s32 1, %s12
  %s15 = scalar_select 0, %s14, %s12
  $region1: #{gru_decoder_forward.1} parent=0
    #allocation2 [shape = 'u8[4096]{0}', space=vmem, size = 0x1000, scoped, tag = 'input window, operand 0, single buffered']
    #allocation3 [shape = 's32[1]{0}', space=sflag, size = 0x4, scoped, tag = 'scoped memory for gru_decoder_forward.1']
    #allocation4 [shape = 's32[1]{0}', space=sflag, size = 0x4, scoped, tag = 'scoped memory for gru_decoder_forward.1']
    #allocation5 [shape = 'u8[4096]{0}', space=vmem, size = 0x1000, scoped, tag = 'input window, operand 1, single buffered']
    #allocation6 [shape = 's32[1]{0}', space=sflag, size = 0x4, scoped, tag = 'scoped memory for gru_decoder_forward.1']
    #allocation7 [shape = 'u8[4096]{0}', space=vmem, size = 0x1000, scoped, tag = 'input window, operand 2, single buffered']
    #allocation8 [shape = 'u8[6144]{0}', space=vmem, size = 0x1800, scoped, tag = 'input window, operand 3, single buffered']
    #allocation9 [shape = 's32[1]{0}', space=sflag, size = 0x4, scoped, tag = 'scoped memory for gru_decoder_forward.1']
    #allocation10 [shape = 'u8[196608]{0}', space=vmem, size = 0x30000, scoped, tag = 'input window, operand 4, single buffered']
    #allocation11 [shape = 'u8[1536]{0}', space=vmem, size = 0x800, scoped, tag = 'input window, operand 5, single buffered']
    #allocation12 [shape = 's32[1]{0}', space=sflag, size = 0x4, scoped, tag = 'scoped memory for gru_decoder_forward.1']
    #allocation13 [shape = 'u8[512]{0}', space=vmem, size = 0x400, scoped, tag = 'input window, operand 6, single buffered']
    #allocation14 [shape = 'u8[65536]{0}', space=vmem, size = 0x10000, scoped, tag = 'input window, operand 7, single buffered']
    #allocation15 [shape = 's32[1]{0}', space=sflag, size = 0x4, scoped, tag = 'scoped memory for gru_decoder_forward.1']
    #allocation16 [shape = 'u8[512]{0}', space=vmem, size = 0x400, scoped, tag = 'input window, operand 8, single buffered']
    #allocation17 [shape = 'u8[4096]{0}', space=vmem, size = 0x1000, scoped, tag = 'output window, operand 0, single buffered']
    #allocation18 [shape = 'u8[4096]{0}', space=vmem, size = 0x1000, scoped, tag = 'output window, operand 1, single buffered']
    #allocation19 [shape = 's32[1]{0}', space=sflag, size = 0x4, scoped, tag = 'scoped memory for gru_decoder_forward.1']
    %16 = vsyncpa [#allocation3], 0
    %17 = vsyncpa [#allocation6], 0
    %18 = vsyncpa [#allocation9], 0
    %19 = vsyncpa [#allocation12], 0
    %20 = vsyncpa [#allocation15], 0
    %21 = vsyncpa [#allocation4], 0
    %22 = vsyncpa [#allocation19], 0
    // Predicated region
    $region2: #{gru_decoder_forward.1} parent=1 // pred_check
      _
    $region3: #{gru_decoder_forward.1} parent=1 // pred_check_branch
      %24 = sbr.rel (0) target = $region5
    $region4: #{gru_decoder_forward.1} parent=1 // pred_region
      %s26 = ssub.s32 128, 128
      %27 = vsyncadd [#allocation3], %s26
      %s29 = sshll.u32 [#allocation2], 4
      %s30 = int_to_ptr.vmem [resolvable:$true] %s29
      %32 = dma.hbm_to_vmem [thread:$0]  %s0, 128, %s30, [#allocation3]
    $region5: #{gru_decoder_forward.1} parent=1 // pred_fallthru
      _
    // Predicated region
    $region6: #{gru_decoder_forward.1} parent=1 // pred_check
      _
    $region7: #{gru_decoder_forward.1} parent=1 // pred_check_branch
      %34 = sbr.rel (0) target = $region9
    $region8: #{gru_decoder_forward.1} parent=1 // pred_region
      %s36 = ssub.s32 128, 128
      %37 = vsyncadd [#allocation6], %s36
      %s39 = sshll.u32 [#allocation5], 4
      %s40 = int_to_ptr.vmem [resolvable:$true] %s39
      %42 = dma.hbm_to_vmem [thread:$0]  %s1, 128, %s40, [#allocation6]
    $region9: #{gru_decoder_forward.1} parent=1 // pred_fallthru
      _
    // Predicated region
    $region10: #{gru_decoder_forward.1} parent=1 // pred_check
      _
    $region11: #{gru_decoder_forward.1} parent=1 // pred_check_branch
      %44 = sbr.rel (0) target = $region13
    $region12: #{gru_decoder_forward.1} parent=1 // pred_region
      %s46 = ssub.s32 128, 128
      %47 = vsyncadd [#allocation6], %s46
      %s49 = sshll.u32 [#allocation7], 4
      %s50 = int_to_ptr.vmem [resolvable:$true] %s49
      %52 = dma.hbm_to_vmem [thread:$0]  %s2, 128, %s50, [#allocation6]
    $region13: #{gru_decoder_forward.1} parent=1 // pred_fallthru
      _
    // Predicated region
    $region14: #{gru_decoder_forward.1} parent=1 // pred_check
      _
    $region15: #{gru_decoder_forward.1} parent=1 // pred_check_branch
      %54 = sbr.rel (0) target = $region17
    $region16: #{gru_decoder_forward.1} parent=1 // pred_region
      %s56 = ssub.s32 192, 192
      %57 = vsyncadd [#allocation9], %s56
      %s59 = sshll.u32 [#allocation8], 4
      %s60 = int_to_ptr.vmem [resolvable:$true] %s59
      %62 = dma.hbm_to_vmem [thread:$0]  %s3, 192, %s60, [#allocation9]
    $region17: #{gru_decoder_forward.1} parent=1 // pred_fallthru
      _
    // Predicated region
    $region18: #{gru_decoder_forward.1} parent=1 // pred_check
      _
    $region19: #{gru_decoder_forward.1} parent=1 // pred_check_branch
      %64 = sbr.rel (0) target = $region21
    $region20: #{gru_decoder_forward.1} parent=1 // pred_region
      %s66 = ssub.s32 6144, 6144
      %67 = vsyncadd [#allocation9], %s66
      %s68 = sshll.u32 [#allocation10], 4
      %s69 = int_to_ptr.vmem [resolvable:$true] %s68
      %74 = dma.hbm_to_vmem [thread:$0]  %s4, 6144, %s69, [#allocation9], 384, 384, 24
    $region21: #{gru_decoder_forward.1} parent=1 // pred_fallthru
      _
    // Predicated region
    $region22: #{gru_decoder_forward.1} parent=1 // pred_check
      _
    $region23: #{gru_decoder_forward.1} parent=1 // pred_check_branch
      %76 = sbr.rel (0) target = $region25
    $region24: #{gru_decoder_forward.1} parent=1 // pred_region
      %s78 = ssub.s32 48, 48
      %79 = vsyncadd [#allocation12], %s78
      %s81 = sshll.u32 [#allocation11], 4
      %s82 = int_to_ptr.vmem [resolvable:$true] %s81
      %84 = dma.hbm_to_vmem [thread:$0]  %s5, 48, %s82, [#allocation12]
    $region25: #{gru_decoder_forward.1} parent=1 // pred_fallthru
      _
    // Predicated region
    $region26: #{gru_decoder_forward.1} parent=1 // pred_check
      _
    $region27: #{gru_decoder_forward.1} parent=1 // pred_check_branch
      %86 = sbr.rel (0) target = $region29
    $region28: #{gru_decoder_forward.1} parent=1 // pred_region
      %s88 = ssub.s32 16, 16
      %89 = vsyncadd [#allocation12], %s88
      %s91 = sshll.u32 [#allocation13], 4
      %s92 = int_to_ptr.vmem [resolvable:$true] %s91
      %94 = dma.hbm_to_vmem [thread:$0]  %s6, 16, %s92, [#allocation12]
    $region29: #{gru_decoder_forward.1} parent=1 // pred_fallthru
      _
    // Predicated region
    $region30: #{gru_decoder_forward.1} parent=1 // pred_check
      _
    $region31: #{gru_decoder_forward.1} parent=1 // pred_check_branch
      %96 = sbr.rel (0) target = $region33
    $region32: #{gru_decoder_forward.1} parent=1 // pred_region
      %s98 = ssub.s32 2048, 2048
      %99 = vsyncadd [#allocation15], %s98
      %s100 = sshll.u32 [#allocation14], 4
      %s101 = int_to_ptr.vmem [resolvable:$true] %s100
      %106 = dma.hbm_to_vmem [thread:$0]  %s7, 2048, %s101, [#allocation15], 128, 128, 8
    $region33: #{gru_decoder_forward.1} parent=1 // pred_fallthru
      _
    // Predicated region
    $region34: #{gru_decoder_forward.1} parent=1 // pred_check
      _
    $region35: #{gru_decoder_forward.1} parent=1 // pred_check_branch
      %108 = sbr.rel (0) target = $region37
    $region36: #{gru_decoder_forward.1} parent=1 // pred_region
      %s110 = ssub.s32 16, 16
      %111 = vsyncadd [#allocation15], %s110
      %s113 = sshll.u32 [#allocation16], 4
      %s114 = int_to_ptr.vmem [resolvable:$true] %s113
      %116 = dma.hbm_to_vmem [thread:$0]  %s8, 16, %s114, [#allocation15]
    $region37: #{gru_decoder_forward.1} parent=1 // pred_fallthru
      _
    // Predicated region
    $region38: #{gru_decoder_forward.1} parent=1 // pred_check
      _
    $region39: #{gru_decoder_forward.1} parent=1 // pred_check_branch
      %118 = sbr.rel (0) target = $region41
    $region40: #{gru_decoder_forward.1} parent=1 // pred_region
      %119 = dma.done [#allocation3], 128
    $region41: #{gru_decoder_forward.1} parent=1 // pred_fallthru
      _
    // Predicated region
    $region42: #{gru_decoder_forward.1} parent=1 // pred_check
      _
    $region43: #{gru_decoder_forward.1} parent=1 // pred_check_branch
      %121 = sbr.rel (0) target = $region45
    $region44: #{gru_decoder_forward.1} parent=1 // pred_region
      %122 = dma.done [#allocation6], 128
    $region45: #{gru_decoder_forward.1} parent=1 // pred_fallthru
      _
    // Predicated region
    $region46: #{gru_decoder_forward.1} parent=1 // pred_check
      _
    $region47: #{gru_decoder_forward.1} parent=1 // pred_check_branch
      %124 = sbr.rel (0) target = $region49
    $region48: #{gru_decoder_forward.1} parent=1 // pred_region
      %125 = dma.done [#allocation6], 128
    $region49: #{gru_decoder_forward.1} parent=1 // pred_fallthru
      _
    // Predicated region
    $region50: #{gru_decoder_forward.1} parent=1 // pred_check
      _
    $region51: #{gru_decoder_forward.1} parent=1 // pred_check_branch
      %127 = sbr.rel (0) target = $region53
    $region52: #{gru_decoder_forward.1} parent=1 // pred_region
      %128 = dma.done [#allocation9], 192
    $region53: #{gru_decoder_forward.1} parent=1 // pred_fallthru
      _
    // Predicated region
    $region54: #{gru_decoder_forward.1} parent=1 // pred_check
      _
    $region55: #{gru_decoder_forward.1} parent=1 // pred_check_branch
      %130 = sbr.rel (0) target = $region57
    $region56: #{gru_decoder_forward.1} parent=1 // pred_region
      %131 = dma.done [#allocation9], 6144
    $region57: #{gru_decoder_forward.1} parent=1 // pred_fallthru
      _
    // Predicated region
    $region58: #{gru_decoder_forward.1} parent=1 // pred_check
      _
    $region59: #{gru_decoder_forward.1} parent=1 // pred_check_branch
      %133 = sbr.rel (0) target = $region61
    $region60: #{gru_decoder_forward.1} parent=1 // pred_region
      %134 = dma.done [#allocation12], 48
    $region61: #{gru_decoder_forward.1} parent=1 // pred_fallthru
      _
    // Predicated region
    $region62: #{gru_decoder_forward.1} parent=1 // pred_check
      _
    $region63: #{gru_decoder_forward.1} parent=1 // pred_check_branch
      %136 = sbr.rel (0) target = $region65
    $region64: #{gru_decoder_forward.1} parent=1 // pred_region
      %137 = dma.done [#allocation12], 16
    $region65: #{gru_decoder_forward.1} parent=1 // pred_fallthru
      _
    // Predicated region
    $region66: #{gru_decoder_forward.1} parent=1 // pred_check
      _
    $region67: #{gru_decoder_forward.1} parent=1 // pred_check_branch
      %139 = sbr.rel (0) target = $region69
    $region68: #{gru_decoder_forward.1} parent=1 // pred_region
      %140 = dma.done [#allocation15], 2048
    $region69: #{gru_decoder_forward.1} parent=1 // pred_fallthru
      _
    // Predicated region
    $region70: #{gru_decoder_forward.1} parent=1 // pred_check
      _
    $region71: #{gru_decoder_forward.1} parent=1 // pred_check_branch
      %142 = sbr.rel (0) target = $region73
    $region72: #{gru_decoder_forward.1} parent=1 // pred_region
      %143 = dma.done [#allocation15], 16
    $region73: #{gru_decoder_forward.1} parent=1 // pred_fallthru
      _
    %v144 = vld [vmem:[#allocation2] sm:$0xff]
    %v145 = vld [vmem:[#allocation5] sm:$0xff]
    %v146 = vld [vmem:[#allocation8] sm:$0xff]
    %v147 = vld [vmem:[#allocation8 + $0x8] sm:$0xf]
    %v148 = vld [vmem:[#allocation11] sm:$0x7]
    %v150 = vlaneseq
    %v151 = vshrl.u32 %v150, 7
    %v152 = vsub.s32 0, %v151
    %v153 = vrot.slane %v148, %v152
    %v154 = vlaneseq
    %v155 = vshrl.u32 %v154, 7
    %v156 = vsub.s32 1, %v155
    %v157 = vrot.slane %v148, %v156
    %v158 = vlaneseq
    %v159 = vshrl.u32 %v158, 7
    %v160 = vsub.s32 2, %v159
    %v161 = vrot.slane %v148, %v160
    %v167 = vcombine.high %v146, %v146
    %vm168 = vcmask 31744
    %v170 = vsel %vm168, %v144, 0
    %vm172 = vcmask 1043456
    %v173 = vsel %vm172, %v146, 0
    %v175 = vsel %vm172, %v167, 0
    %v177 = vsel %vm172, %v147, 0
    %179 = vmatprep.subr.mxu0 %v175
    %180 = vmatpush1.msra.mxu0 %v173
    %181 = vmatprep.subr.mxu0 0.0
    %182 = vmatpush1.msra.mxu0 0.0
    %183 = vmatprep.subr.mxu0 0.0
    %184 = vmatpush1.msra.mxu0 0.0
    %185 = vmatprep.subr.mxu0 0.0
    %186 = vmatpush1.msra.mxu0 0.0
    %187 = vmatprep.subr.mxu0 0.0
    %188 = vmatpush1.msra.mxu0 0.0
    %189 = vmatprep.subr.mxu0 0.0
    %190 = vmatpush1.msra.mxu0 0.0
    %191 = vmatprep.subr.mxu0 0.0
    %192 = vmatpush1.msra.mxu0 0.0
    %193 = vmatprep.subr.mxu0 0.0
    %194 = vmatpush1.msra.mxu0 0.0
    %195 = vmatprep.subr.mxu0 0.0
    %196 = vmatpush1.msra.mxu0 0.0
    %197 = vmatprep.subr.mxu0 0.0
    %198 = vmatpush1.msra.mxu0 0.0
    %199 = vmatprep.subr.mxu0 0.0
    %200 = vmatpush1.msra.mxu0 0.0
    %201 = vmatprep.subr.mxu0 0.0
    %202 = vmatpush1.msra.mxu0 0.0
    %203 = vmatprep.subr.mxu0 0.0
    %204 = vmatpush1.msra.mxu0 0.0
    %205 = vmatprep.subr.mxu0 0.0
    %206 = vmatpush1.msra.mxu0 0.0
    %207 = vmatprep.subr.mxu0 0.0
    %208 = vmatpush1.msra.mxu0 0.0
    %209 = vmatprep.subr.mxu0 0.0
    %210 = vmatpush1.msra.mxu0 0.0
    %211 = vmatprep.subr.mxu0 0.0
    %212 = vmatpush1.msra.mxu0 0.0
    %213 = vmatprep.subr.mxu0 0.0
    %214 = vmatpush1.msra.mxu0 0.0
    %215 = vmatprep.subr.mxu0 0.0
    %216 = vmatpush1.msra.mxu0 0.0
    %217 = vmatprep.subr.mxu0 0.0
    %218 = vmatpush1.msra.mxu0 0.0
    %219 = vmatprep.subr.mxu0 0.0
    %220 = vmatpush1.msra.mxu0 0.0
    %221 = vmatprep.subr.mxu0 0.0
    %222 = vmatpush1.msra.mxu0 0.0
    %223 = vmatprep.subr.mxu0 0.0
    %224 = vmatpush1.msra.mxu0 0.0
    %225 = vmatprep.subr.mxu0 0.0
    %226 = vmatpush1.msra.mxu0 0.0
    %227 = vmatprep.subr.mxu0 0.0
    %228 = vmatpush1.msra.mxu0 0.0
    %229 = vmatprep.subr.mxu0 0.0
    %230 = vmatpush1.msra.mxu0 0.0
    %231 = vmatprep.subr.mxu0 0.0
    %232 = vmatpush1.msra.mxu0 0.0
    %233 = vmatprep.subr.mxu0 0.0
    %234 = vmatpush1.msra.mxu0 0.0
    %235 = vmatprep.subr.mxu0 0.0
    %236 = vmatpush1.msra.mxu0 0.0
    %237 = vmatprep.subr.mxu0 0.0
    %238 = vmatpush1.msra.mxu0 0.0
    %239 = vmatprep.subr.mxu0 0.0
    %240 = vmatpush1.msra.mxu0 0.0
    %241 = vmatprep.subr.mxu0 0.0
    %242 = vmatpush1.msra.mxu0 0.0
    %243 = vmatprep.mubr.f32.mxu0 0.0
    %244 = vmatmul.mubr.f32.gmra.mrb[0].mxu0 %v170
    %v245 = vpop.f32.mrb[0].mxu0
    %v246 = vadd.f32 %v153, %v245
    %v247 = vpop.f32.mrb[0].mxu0
    %v248 = vadd.f32 %v157, %v247
    %249 = vdwg.mxu0
    %250 = vmatprep.subr.mxu0 0.0
    %251 = vmatpush1.msra.mxu0 %v177
    %252 = vmatprep.subr.mxu0 0.0
    %253 = vmatpush1.msra.mxu0 0.0
    %254 = vmatprep.subr.mxu0 0.0
    %255 = vmatpush1.msra.mxu0 0.0
    %256 = vmatprep.subr.mxu0 0.0
    %257 = vmatpush1.msra.mxu0 0.0
    %258 = vmatprep.subr.mxu0 0.0
    %259 = vmatpush1.msra.mxu0 0.0
    %260 = vmatprep.subr.mxu0 0.0
    %261 = vmatpush1.msra.mxu0 0.0
    %262 = vmatprep.subr.mxu0 0.0
    %263 = vmatpush1.msra.mxu0 0.0
    %264 = vmatprep.subr.mxu0 0.0
    %265 = vmatpush1.msra.mxu0 0.0
    %266 = vmatprep.subr.mxu0 0.0
    %267 = vmatpush1.msra.mxu0 0.0
    %268 = vmatprep.subr.mxu0 0.0
    %269 = vmatpush1.msra.mxu0 0.0
    %270 = vmatprep.subr.mxu0 0.0
    %271 = vmatpush1.msra.mxu0 0.0
    %272 = vmatprep.subr.mxu0 0.0
    %273 = vmatpush1.msra.mxu0 0.0
    %274 = vmatprep.subr.mxu0 0.0
    %275 = vmatpush1.msra.mxu0 0.0
    %276 = vmatprep.subr.mxu0 0.0
    %277 = vmatpush1.msra.mxu0 0.0
    %278 = vmatprep.subr.mxu0 0.0
    %279 = vmatpush1.msra.mxu0 0.0
    %280 = vmatprep.subr.mxu0 0.0
    %281 = vmatpush1.msra.mxu0 0.0
    %282 = vmatprep.subr.mxu0 0.0
    %283 = vmatpush1.msra.mxu0 0.0
    %284 = vmatprep.subr.mxu0 0.0
    %285 = vmatpush1.msra.mxu0 0.0
    %286 = vmatprep.subr.mxu0 0.0
    %287 = vmatpush1.msra.mxu0 0.0
    %288 = vmatprep.subr.mxu0 0.0
    %289 = vmatpush1.msra.mxu0 0.0
    %290 = vmatprep.subr.mxu0 0.0
    %291 = vmatpush1.msra.mxu0 0.0
    %292 = vmatprep.subr.mxu0 0.0
    %293 = vmatpush1.msra.mxu0 0.0
    %294 = vmatprep.subr.mxu0 0.0
    %295 = vmatpush1.msra.mxu0 0.0
    %296 = vmatprep.subr.mxu0 0.0
    %297 = vmatpush1.msra.mxu0 0.0
    %298 = vmatprep.subr.mxu0 0.0
    %299 = vmatpush1.msra.mxu0 0.0
    %300 = vmatprep.subr.mxu0 0.0
    %301 = vmatpush1.msra.mxu0 0.0
    %302 = vmatprep.subr.mxu0 0.0
    %303 = vmatpush1.msra.mxu0 0.0
    %304 = vmatprep.subr.mxu0 0.0
    %305 = vmatpush1.msra.mxu0 0.0
    %306 = vmatprep.subr.mxu0 0.0
    %307 = vmatpush1.msra.mxu0 0.0
    %308 = vmatprep.subr.mxu0 0.0
    %309 = vmatpush1.msra.mxu0 0.0
    %310 = vmatprep.subr.mxu0 0.0
    %311 = vmatpush1.msra.mxu0 0.0
    %312 = vmatprep.subr.mxu0 0.0
    %313 = vmatpush1.msra.mxu0 0.0
    %314 = vmatprep.mubr.f32.mxu0 0.0
    %315 = vmatmul.mubr.f32.gmra.mrb[0].mxu0 %v170
    %v316 = vpop.f32.mrb[0].mxu0
    %v317 = vadd.f32 %v161, %v316
    %v318 = vpop.f32.mrb[0].mxu0
    %319 = vdwg.mxu0
    %v320 = vld [vmem:[#allocation10] sm:$0xff]
    %v321 = vld [vmem:[#allocation10 + $0x8] sm:$0xff]
    %v322 = vld [vmem:[#allocation10 + $0x10] sm:$0xff]
    %v323 = vld [vmem:[#allocation10 + $0x18] sm:$0xff]
    %v324 = vld [vmem:[#allocation10 + $0x20] sm:$0xff]
    %v325 = vld [vmem:[#allocation10 + $0x28] sm:$0xff]
    %v326 = vld [vmem:[#allocation10 + $0x30] sm:$0xff]
    %v327 = vld [vmem:[#allocation10 + $0x38] sm:$0xff]
    %v328 = vld [vmem:[#allocation10 + $0x40] sm:$0xff]
    %v329 = vld [vmem:[#allocation10 + $0x48] sm:$0xff]
    %v330 = vld [vmem:[#allocation10 + $0x50] sm:$0xff]
    %v331 = vld [vmem:[#allocation10 + $0x58] sm:$0xff]
    %v332 = vld [vmem:[#allocation10 + $0x60] sm:$0xff]
    %v333 = vld [vmem:[#allocation10 + $0x68] sm:$0xff]
    %v334 = vld [vmem:[#allocation10 + $0x70] sm:$0xff]
    %v335 = vld [vmem:[#allocation10 + $0x78] sm:$0xff]
    %v336 = vld [vmem:[#allocation10 + $0x80] sm:$0xff]
    %v337 = vld [vmem:[#allocation10 + $0x88] sm:$0xff]
    %v338 = vld [vmem:[#allocation10 + $0x90] sm:$0xff]
    %v339 = vld [vmem:[#allocation10 + $0x98] sm:$0xff]
    %v340 = vld [vmem:[#allocation10 + $0xa0] sm:$0xff]
    %v341 = vld [vmem:[#allocation10 + $0xa8] sm:$0xff]
    %v342 = vld [vmem:[#allocation10 + $0xb0] sm:$0xff]
    %v343 = vld [vmem:[#allocation10 + $0xb8] sm:$0xff]
    %v344 = vld [vmem:[#allocation10 + $0xc0] sm:$0xff]
    %v345 = vld [vmem:[#allocation10 + $0xc8] sm:$0xff]
    %v346 = vld [vmem:[#allocation10 + $0xd0] sm:$0xff]
    %v347 = vld [vmem:[#allocation10 + $0xd8] sm:$0xff]
    %v348 = vld [vmem:[#allocation10 + $0xe0] sm:$0xff]
    %v349 = vld [vmem:[#allocation10 + $0xe8] sm:$0xff]
    %v350 = vld [vmem:[#allocation10 + $0xf0] sm:$0xff]
    %v351 = vld [vmem:[#allocation10 + $0xf8] sm:$0xff]
    %v352 = vld [vmem:[#allocation10 + $0x100] sm:$0xff]
    %v353 = vld [vmem:[#allocation10 + $0x108] sm:$0xff]
    %v354 = vld [vmem:[#allocation10 + $0x110] sm:$0xff]
    %v355 = vld [vmem:[#allocation10 + $0x118] sm:$0xff]
    %v356 = vld [vmem:[#allocation10 + $0x120] sm:$0xff]
    %v357 = vld [vmem:[#allocation10 + $0x128] sm:$0xff]
    %v358 = vld [vmem:[#allocation10 + $0x130] sm:$0xff]
    %v359 = vld [vmem:[#allocation10 + $0x138] sm:$0xff]
    %v360 = vld [vmem:[#allocation10 + $0x140] sm:$0xff]
    %v361 = vld [vmem:[#allocation10 + $0x148] sm:$0xff]
    %v362 = vld [vmem:[#allocation10 + $0x150] sm:$0xff]
    %v363 = vld [vmem:[#allocation10 + $0x158] sm:$0xff]
    %v364 = vld [vmem:[#allocation10 + $0x160] sm:$0xff]
    %v365 = vld [vmem:[#allocation10 + $0x168] sm:$0xff]
    %v366 = vld [vmem:[#allocation10 + $0x170] sm:$0xff]
    %v367 = vld [vmem:[#allocation10 + $0x178] sm:$0xff]
    %368 = vmatprep.subr.mxu0 %v321
    %369 = vmatpush1.msra.mxu0 %v320
    %370 = vmatprep.subr.mxu0 %v324
    %371 = vmatpush1.msra.mxu0 %v323
    %372 = vmatprep.subr.mxu0 %v327
    %373 = vmatpush1.msra.mxu0 %v326
    %374 = vmatprep.subr.mxu0 %v330
    %375 = vmatpush1.msra.mxu0 %v329
    %376 = vmatprep.subr.mxu0 %v333
    %377 = vmatpush1.msra.mxu0 %v332
    %378 = vmatprep.subr.mxu0 %v336
    %379 = vmatpush1.msra.mxu0 %v335
    %380 = vmatprep.subr.mxu0 %v339
    %381 = vmatpush1.msra.mxu0 %v338
    %382 = vmatprep.subr.mxu0 %v342
    %383 = vmatpush1.msra.mxu0 %v341
    %384 = vmatprep.subr.mxu0 %v345
    %385 = vmatpush1.msra.mxu0 %v344
    %386 = vmatprep.subr.mxu0 %v348
    %387 = vmatpush1.msra.mxu0 %v347
    %388 = vmatprep.subr.mxu0 %v351
    %389 = vmatpush1.msra.mxu0 %v350
    %390 = vmatprep.subr.mxu0 %v354
    %391 = vmatpush1.msra.mxu0 %v353
    %392 = vmatprep.subr.mxu0 %v357
    %393 = vmatpush1.msra.mxu0 %v356
    %394 = vmatprep.subr.mxu0 %v360
    %395 = vmatpush1.msra.mxu0 %v359
    %396 = vmatprep.subr.mxu0 %v363
    %397 = vmatpush1.msra.mxu0 %v362
    %398 = vmatprep.subr.mxu0 %v366
    %399 = vmatpush1.msra.mxu0 %v365
    %400 = vmatprep.subr.mxu0 0.0
    %401 = vmatpush1.msra.mxu0 0.0
    %402 = vmatprep.subr.mxu0 0.0
    %403 = vmatpush1.msra.mxu0 0.0
    %404 = vmatprep.subr.mxu0 0.0
    %405 = vmatpush1.msra.mxu0 0.0
    %406 = vmatprep.subr.mxu0 0.0
    %407 = vmatpush1.msra.mxu0 0.0
    %408 = vmatprep.subr.mxu0 0.0
    %409 = vmatpush1.msra.mxu0 0.0
    %410 = vmatprep.subr.mxu0 0.0
    %411 = vmatpush1.msra.mxu0 0.0
    %412 = vmatprep.subr.mxu0 0.0
    %413 = vmatpush1.msra.mxu0 0.0
    %414 = vmatprep.subr.mxu0 0.0
    %415 = vmatpush1.msra.mxu0 0.0
    %416 = vmatprep.subr.mxu0 0.0
    %417 = vmatpush1.msra.mxu0 0.0
    %418 = vmatprep.subr.mxu0 0.0
    %419 = vmatpush1.msra.mxu0 0.0
    %420 = vmatprep.subr.mxu0 0.0
    %421 = vmatpush1.msra.mxu0 0.0
    %422 = vmatprep.subr.mxu0 0.0
    %423 = vmatpush1.msra.mxu0 0.0
    %424 = vmatprep.subr.mxu0 0.0
    %425 = vmatpush1.msra.mxu0 0.0
    %426 = vmatprep.subr.mxu0 0.0
    %427 = vmatpush1.msra.mxu0 0.0
    %428 = vmatprep.subr.mxu0 0.0
    %429 = vmatpush1.msra.mxu0 0.0
    %430 = vmatprep.subr.mxu0 0.0
    %431 = vmatpush1.msra.mxu0 0.0
    %432 = vmatprep.mubr.f32.mxu0 0.0
    %433 = vmatmul.mubr.f32.gmra.mrb[0].mxu0 %v145
    %v434 = vpop.f32.mrb[0].mxu0
    %v435 = vadd.f32 0.0, %v434
    %v436 = vpop.f32.mrb[0].mxu0
    %v437 = vadd.f32 0.0, %v436
    %438 = vdwg.mxu0
    %439 = vmatprep.subr.mxu0 0.0
    %440 = vmatpush1.msra.mxu0 %v322
    %441 = vmatprep.subr.mxu0 0.0
    %442 = vmatpush1.msra.mxu0 %v325
    %443 = vmatprep.subr.mxu0 0.0
    %444 = vmatpush1.msra.mxu0 %v328
    %445 = vmatprep.subr.mxu0 0.0
    %446 = vmatpush1.msra.mxu0 %v331
    %447 = vmatprep.subr.mxu0 0.0
    %448 = vmatpush1.msra.mxu0 %v334
    %449 = vmatprep.subr.mxu0 0.0
    %450 = vmatpush1.msra.mxu0 %v337
    %451 = vmatprep.subr.mxu0 0.0
    %452 = vmatpush1.msra.mxu0 %v340
    %453 = vmatprep.subr.mxu0 0.0
    %454 = vmatpush1.msra.mxu0 %v343
    %455 = vmatprep.subr.mxu0 0.0
    %456 = vmatpush1.msra.mxu0 %v346
    %457 = vmatprep.subr.mxu0 0.0
    %458 = vmatpush1.msra.mxu0 %v349
    %459 = vmatprep.subr.mxu0 0.0
    %460 = vmatpush1.msra.mxu0 %v352
    %461 = vmatprep.subr.mxu0 0.0
    %462 = vmatpush1.msra.mxu0 %v355
    %463 = vmatprep.subr.mxu0 0.0
    %464 = vmatpush1.msra.mxu0 %v358
    %465 = vmatprep.subr.mxu0 0.0
    %466 = vmatpush1.msra.mxu0 %v361
    %467 = vmatprep.subr.mxu0 0.0
    %468 = vmatpush1.msra.mxu0 %v364
    %469 = vmatprep.subr.mxu0 0.0
    %470 = vmatpush1.msra.mxu0 %v367
    %471 = vmatprep.subr.mxu0 0.0
    %472 = vmatpush1.msra.mxu0 0.0
    %473 = vmatprep.subr.mxu0 0.0
    %474 = vmatpush1.msra.mxu0 0.0
    %475 = vmatprep.subr.mxu0 0.0
    %476 = vmatpush1.msra.mxu0 0.0
    %477 = vmatprep.subr.mxu0 0.0
    %478 = vmatpush1.msra.mxu0 0.0
    %479 = vmatprep.subr.mxu0 0.0
    %480 = vmatpush1.msra.mxu0 0.0
    %481 = vmatprep.subr.mxu0 0.0
    %482 = vmatpush1.msra.mxu0 0.0
    %483 = vmatprep.subr.mxu0 0.0
    %484 = vmatpush1.msra.mxu0 0.0
    %485 = vmatprep.subr.mxu0 0.0
    %486 = vmatpush1.msra.mxu0 0.0
    %487 = vmatprep.subr.mxu0 0.0
    %488 = vmatpush1.msra.mxu0 0.0
    %489 = vmatprep.subr.mxu0 0.0
    %490 = vmatpush1.msra.mxu0 0.0
    %491 = vmatprep.subr.mxu0 0.0
    %492 = vmatpush1.msra.mxu0 0.0
    %493 = vmatprep.subr.mxu0 0.0
    %494 = vmatpush1.msra.mxu0 0.0
    %495 = vmatprep.subr.mxu0 0.0
    %496 = vmatpush1.msra.mxu0 0.0
    %497 = vmatprep.subr.mxu0 0.0
    %498 = vmatpush1.msra.mxu0 0.0
    %499 = vmatprep.subr.mxu0 0.0
    %500 = vmatpush1.msra.mxu0 0.0
    %501 = vmatprep.subr.mxu0 0.0
    %502 = vmatpush1.msra.mxu0 0.0
    %503 = vmatprep.mubr.f32.mxu0 0.0
    %504 = vmatmul.mubr.f32.gmra.mrb[0].mxu0 %v145
    %v505 = vpop.f32.mrb[0].mxu0
    %v506 = vadd.f32 0.0, %v505
    %v507 = vpop.f32.mrb[0].mxu0
    %508 = vdwg.mxu0
    %v509 = vadd.f32 %v246, %v435
    %v510 = vadd.f32 %v248, %v437
    %v511 = vxor.u32 %v509, 2147483648
    %v512 = vxor.u32 %v510, 2147483648
    %v513 = vmul.f32 %v511, 1.442695
    %v514 = vpow.pop %v513
    %v515 = vmul.f32 %v512, 1.442695
    %v516 = vpow.pop %v515
    %v517 = vadd.f32 %v514, 1.0
    %v518 = vadd.f32 %v516, 1.0
    %v519 = vrcp.pop %v517
    %v520 = vmul.f32 1.0, %v519
    %v521 = vrcp.pop %v518
    %v522 = vmul.f32 1.0, %v521
    %v523 = vld [vmem:[#allocation13] sm:$0x1]
    %v525 = vlaneseq
    %v526 = vshrl.u32 %v525, 7
    %v527 = vsub.s32 0, %v526
    %v528 = vrot.slane %v523, %v527
    %v530 = vadd.f32 %v506, %v528
    %v531 = vmul.f32 %v520, %v530
    %v532 = vadd.f32 %v317, %v531
    %v533 = vtanh.pop %v532
    %v534 = vld [vmem:[#allocation7] sm:$0xff]
    %v535 = vsub.f32 1.0, %v522
    %v536 = vmul.f32 %v535, %v533
    %v537 = vmul.f32 %v522, %v534
    %v538 = vadd.f32 %v536, %v537
    %539 = vst [vmem:[#allocation18] sm:$0xff] %v538
    %p540 = scmp.eq.s32.totalorder 0, 0
    // Predicated region
    $region74: #{gru_decoder_forward.1} parent=1 // pred_check
      %p541 = pneg %p540
    $region75: #{gru_decoder_forward.1} parent=1 // pred_check_branch
      %543 = sbr.rel (%p541) target = $region77
    $region76: #{gru_decoder_forward.1} parent=1 // pred_region
      %v544 = vld [vmem:[#allocation16] sm:$0x1]
      %v546 = vlaneseq
      %v547 = vshrl.u32 %v546, 7
      %v548 = vsub.s32 0, %v547
      %v549 = vrot.slane %v544, %v548
      %551 = vst [vmem:[#allocation17] sm:$0xff] %v549
    $region77: #{gru_decoder_forward.1} parent=1 // pred_fallthru
      _
    %v552 = vld [vmem:[#allocation17] sm:$0xff]
    %v553 = vld [vmem:[#allocation14] sm:$0xff]
    %v554 = vld [vmem:[#allocation14 + $0x8] sm:$0xff]
    %v555 = vld [vmem:[#allocation14 + $0x10] sm:$0xff]
    %v556 = vld [vmem:[#allocation14 + $0x18] sm:$0xff]
    %v557 = vld [vmem:[#allocation14 + $0x20] sm:$0xff]
    %v558 = vld [vmem:[#allocation14 + $0x28] sm:$0xff]
    %v559 = vld [vmem:[#allocation14 + $0x30] sm:$0xff]
    %v560 = vld [vmem:[#allocation14 + $0x38] sm:$0xff]
    %v561 = vld [vmem:[#allocation14 + $0x40] sm:$0xff]
    %v562 = vld [vmem:[#allocation14 + $0x48] sm:$0xff]
    %v563 = vld [vmem:[#allocation14 + $0x50] sm:$0xff]
    %v564 = vld [vmem:[#allocation14 + $0x58] sm:$0xff]
    %v565 = vld [vmem:[#allocation14 + $0x60] sm:$0xff]
    %v566 = vld [vmem:[#allocation14 + $0x68] sm:$0xff]
    %v567 = vld [vmem:[#allocation14 + $0x70] sm:$0xff]
    %v568 = vld [vmem:[#allocation14 + $0x78] sm:$0xff]
    %569 = vmatprep.subr.mxu0 0.0
    %570 = vmatpush1.msra.mxu0 %v553
    %571 = vmatprep.subr.mxu0 0.0
    %572 = vmatpush1.msra.mxu0 %v554
    %573 = vmatprep.subr.mxu0 0.0
    %574 = vmatpush1.msra.mxu0 %v555
    %575 = vmatprep.subr.mxu0 0.0
    %576 = vmatpush1.msra.mxu0 %v556
    %577 = vmatprep.subr.mxu0 0.0
    %578 = vmatpush1.msra.mxu0 %v557
    %579 = vmatprep.subr.mxu0 0.0
    %580 = vmatpush1.msra.mxu0 %v558
    %581 = vmatprep.subr.mxu0 0.0
    %582 = vmatpush1.msra.mxu0 %v559
    %583 = vmatprep.subr.mxu0 0.0
    %584 = vmatpush1.msra.mxu0 %v560
    %585 = vmatprep.subr.mxu0 0.0
    %586 = vmatpush1.msra.mxu0 %v561
    %587 = vmatprep.subr.mxu0 0.0
    %588 = vmatpush1.msra.mxu0 %v562
    %589 = vmatprep.subr.mxu0 0.0
    %590 = vmatpush1.msra.mxu0 %v563
    %591 = vmatprep.subr.mxu0 0.0
    %592 = vmatpush1.msra.mxu0 %v564
    %593 = vmatprep.subr.mxu0 0.0
    %594 = vmatpush1.msra.mxu0 %v565
    %595 = vmatprep.subr.mxu0 0.0
    %596 = vmatpush1.msra.mxu0 %v566
    %597 = vmatprep.subr.mxu0 0.0
    %598 = vmatpush1.msra.mxu0 %v567
    %599 = vmatprep.subr.mxu0 0.0
    %600 = vmatpush1.msra.mxu0 %v568
    %601 = vmatprep.subr.mxu0 0.0
    %602 = vmatpush1.msra.mxu0 0.0
    %603 = vmatprep.subr.mxu0 0.0
    %604 = vmatpush1.msra.mxu0 0.0
    %605 = vmatprep.subr.mxu0 0.0
    %606 = vmatpush1.msra.mxu0 0.0
    %607 = vmatprep.subr.mxu0 0.0
    %608 = vmatpush1.msra.mxu0 0.0
    %609 = vmatprep.subr.mxu0 0.0
    %610 = vmatpush1.msra.mxu0 0.0
    %611 = vmatprep.subr.mxu0 0.0
    %612 = vmatpush1.msra.mxu0 0.0
    %613 = vmatprep.subr.mxu0 0.0
    %614 = vmatpush1.msra.mxu0 0.0
    %615 = vmatprep.subr.mxu0 0.0
    %616 = vmatpush1.msra.mxu0 0.0
    %617 = vmatprep.subr.mxu0 0.0
    %618 = vmatpush1.msra.mxu0 0.0
    %619 = vmatprep.subr.mxu0 0.0
    %620 = vmatpush1.msra.mxu0 0.0
    %621 = vmatprep.subr.mxu0 0.0
    %622 = vmatpush1.msra.mxu0 0.0
    %623 = vmatprep.subr.mxu0 0.0
    %624 = vmatpush1.msra.mxu0 0.0
    %625 = vmatprep.subr.mxu0 0.0
    %626 = vmatpush1.msra.mxu0 0.0
    %627 = vmatprep.subr.mxu0 0.0
    %628 = vmatpush1.msra.mxu0 0.0
    %629 = vmatprep.subr.mxu0 0.0
    %630 = vmatpush1.msra.mxu0 0.0
    %631 = vmatprep.subr.mxu0 0.0
    %632 = vmatpush1.msra.mxu0 0.0
    %633 = vmatprep.mubr.f32.mxu0 0.0
    %634 = vmatmul.mubr.f32.gmra.mrb[0].mxu0 %v538
    %v635 = vpop.f32.mrb[0].mxu0
    %v636 = vadd.f32 0.0, %v635
    %v637 = vpop.f32.mrb[0].mxu0
    %638 = vdwg.mxu0
    %v639 = vadd.f32 %v552, %v636
    %640 = vst [vmem:[#allocation17] sm:$0xff] %v639
    // Predicated region
    $region78: #{gru_decoder_forward.1} parent=1 // pred_check
      _
    $region79: #{gru_decoder_forward.1} parent=1 // pred_check_branch
      %642 = sbr.rel (0) target = $region81
    $region80: #{gru_decoder_forward.1} parent=1 // pred_region
      %s644 = ssub.s32 128, 128
      %645 = vsyncadd [#allocation4], %s644
      %s647 = sshll.u32 [#allocation17], 4
      %s648 = int_to_ptr.vmem [resolvable:$true] %s647
      %650 = dma.vmem_to_hbm [thread:$0]  %s648, 128, %s9, [#allocation4]
    $region81: #{gru_decoder_forward.1} parent=1 // pred_fallthru
      _
    // Predicated region
    $region82: #{gru_decoder_forward.1} parent=1 // pred_check
      _
    $region83: #{gru_decoder_forward.1} parent=1 // pred_check_branch
      %652 = sbr.rel (0) target = $region85
    $region84: #{gru_decoder_forward.1} parent=1 // pred_region
      %s654 = ssub.s32 128, 128
      %655 = vsyncadd [#allocation19], %s654
      %s657 = sshll.u32 [#allocation18], 4
      %s658 = int_to_ptr.vmem [resolvable:$true] %s657
      %660 = dma.vmem_to_hbm [thread:$0]  %s658, 128, %s10, [#allocation19]
    $region85: #{gru_decoder_forward.1} parent=1 // pred_fallthru
      _
    // Predicated region
    $region86: #{gru_decoder_forward.1} parent=1 // pred_check
      _
    $region87: #{gru_decoder_forward.1} parent=1 // pred_check_branch
      %662 = sbr.rel (0) target = $region89
    $region88: #{gru_decoder_forward.1} parent=1 // pred_region
      %663 = dma.done [#allocation4], 128
    $region89: #{gru_decoder_forward.1} parent=1 // pred_fallthru
      _
    // Predicated region
    $region90: #{gru_decoder_forward.1} parent=1 // pred_check
      _
    $region91: #{gru_decoder_forward.1} parent=1 // pred_check_branch
      %665 = sbr.rel (0) target = $region93
    $region92: #{gru_decoder_forward.1} parent=1 // pred_region
      %666 = dma.done [#allocation19], 128
    $region93: #{gru_decoder_forward.1} parent=1 // pred_fallthru
      _
    %667 = vsyncpa [#allocation3], 1
    %668 = vsyncpa [#allocation6], 1
    %669 = vsyncpa [#allocation9], 1
    %670 = vsyncpa [#allocation12], 1
    %671 = vsyncpa [#allocation15], 1
    %672 = vsyncpa [#allocation4], 1
    %673 = vsyncpa [#allocation19], 1

</llo_original>
